<compile_context>
chip_gen: v7x
topology: tpu7x:2x2x1
jax: 0.10.0
libtpu: 0.0.40
codegen_flags: <defaults>
</compile_context>

<pallas_src>
import functools

import jax
import jax.numpy as jnp
from jax.experimental import pallas as pl
from jax.experimental.pallas import tpu as pltpu


def _head_kernel(x_ref, w_ref, b_ref, o_ref, acc_ref, *, inv_hw):
    # x_ref: (B_TILE, C_TILE, HW)   NCHW layout: C on sublanes, HW on lanes
    # w_ref: (C_TILE, N_PAD)        pre-transposed, zero-padded Linear weight
    # b_ref: (1, N_PAD)             zero-padded bias
    # o_ref: (B_TILE, N_PAD)        logits (padded)
    # acc_ref: VMEM (B_TILE, N_PAD) f32 accumulator across channel tiles
    k = pl.program_id(1)

    @pl.when(k == 0)
    def _():
        acc_ref[...] = jnp.zeros_like(acc_ref)

    # Spatial sum (lane-axis reduction) of this channel slab.
    pooled = jnp.sum(x_ref[...], axis=-1)                    # (B_TILE, C_TILE)
    # Partial contribution of this channel slab to the logits.
    acc_ref[...] += jnp.dot(pooled, w_ref[...],
                            preferred_element_type=jnp.float32)

    @pl.when(k == pl.num_programs(1) - 1)
    def _():
        # (sum-pool @ W) * (1/HW)  ==  mean-pool @ W ; then add bias.
        o_ref[...] = acc_ref[...] * inv_hw + b_ref[...]


def resnest_head(x_nchw, weight, bias, *, c_tile=256,
                 vmem_limit_bytes=48 * 1024 * 1024):
    """x_nchw: (B, C, H, W) float32 feature map (backbone output, NCHW).
    weight:   (num_classes, C) float32   (PyTorch Linear layout)
    bias:     (num_classes,)   float32
    returns   (B, num_classes) float32 logits
    """
    B, C, H, W = x_nchw.shape
    HW = H * W
    num_classes = weight.shape[0]

    # Free view (contiguous): no HBM transpose / copy of the feature map.
    x = x_nchw.reshape(B, C, HW)

    # Pad class dim to a lane-dense multiple of 128 (unmasked output stores).
    n_pad = max(128, ((num_classes + 127) // 128) * 128)
    w_t = jnp.pad(jnp.transpose(weight), ((0, 0), (0, n_pad - num_classes)))
    b2 = jnp.pad(bias, (0, n_pad - num_classes)).reshape(1, n_pad)

    # Channel (reduction) tile: multiple of 8, divides C (=2048 for ResNeSt).
    c_tile = min(c_tile, C)
    assert C % c_tile == 0, "C must be divisible by c_tile"

    # Batch tile: full B when small; otherwise a power-of-two multiple of 8
    # sized so the double-buffered x tile stays well inside the VMEM budget.
    if B <= 8:
        b_tile = B
    else:
        b_tile = 8
        while (b_tile * 2 <= B and B % (b_tile * 2) == 0 and
               2 * (b_tile * 2) * c_tile * HW * 4 <= vmem_limit_bytes // 2):
            b_tile *= 2
    assert B % b_tile == 0

    grid = (B // b_tile, C // c_tile)

    cost = pl.CostEstimate(
        flops=B * C * HW + 2 * B * C * n_pad,
        transcendentals=0,
        bytes_accessed=(B * C * HW + C * n_pad + n_pad + B * n_pad) * 4,
    )

    kernel = functools.partial(_head_kernel, inv_hw=1.0 / float(HW))

    out = pl.pallas_call(
        kernel,
        out_shape=jax.ShapeDtypeStruct((B, n_pad), jnp.float32),
        grid_spec=pltpu.PrefetchScalarGridSpec(
            num_scalar_prefetch=0,
            grid=grid,
            in_specs=[
                # Feature map tile: (B_TILE, C_TILE, HW), HW is full extent.
                pl.BlockSpec((b_tile, c_tile, HW), lambda i, k: (i, k, 0)),
                # Weight slab for this channel tile.
                pl.BlockSpec((c_tile, n_pad), lambda i, k: (k, 0)),
                # Bias: VMEM-resident across all grid steps.
                pl.BlockSpec((1, n_pad), lambda i, k: (0, 0)),
            ],
            out_specs=pl.BlockSpec((b_tile, n_pad), lambda i, k: (i, 0)),
            scratch_shapes=[pltpu.VMEM((b_tile, n_pad), jnp.float32)],
        ),
        compiler_params=pltpu.CompilerParams(
            dimension_semantics=("parallel", "arbitrary"),
            vmem_limit_bytes=vmem_limit_bytes),
        cost_estimate=cost,
    )(x, w_t, b2)

    return out[:, :num_classes]


if __name__ == "__main__":
    key = jax.random.PRNGKey(0)
    kx, kw, kb = jax.random.split(key, 3)

    B, C, H, W = 2, 2048, 4, 4        # small batch/spatial; C fixed by module
    num_classes = 10

    # Backbone output feature map (synthetic, deterministic), NCHW like PyTorch.
    x = jax.random.normal(kx, (B, C, H, W), dtype=jnp.float32)

    # Linear(2048, num_classes) params, PyTorch-default-style uniform init.
    bound = 1.0 / jnp.sqrt(jnp.float32(C))
    weight = jax.random.uniform(kw, (num_classes, C), jnp.float32, -bound, bound)
    bias = jax.random.uniform(kb, (num_classes,), jnp.float32, -bound, bound)

    out = resnest_head(x, weight, bias)
    out = jax.block_until_ready(out)

    # Reference check (plain JAX).
    pooled_ref = jnp.mean(x, axis=(2, 3))                       # (B, C)
    ref = pooled_ref @ weight.T + bias                          # (B, num_classes)
    assert out.shape == (B, num_classes)
    assert jnp.allclose(out, ref, atol=1e-4, rtol=1e-4)

    print("KERNEL_OK")
</pallas_src>

<mosaic_0001>
module attributes {stable_mosaic.version = 11 : i64} {
  func.func @_head_kernel(%arg0: i32, %arg1: i32, %arg2: memref<2x256x16xf32, #tpu.memory_space<vmem>>, %arg3: memref<256x128xf32, #tpu.memory_space<vmem>>, %arg4: memref<1x128xf32, #tpu.memory_space<vmem>>, %arg5: memref<2x128xf32, #tpu.memory_space<vmem>>, %arg6: memref<2x128xf32, #tpu.memory_space<vmem>>) attributes {dimension_semantics = [#tpu.dimension_semantics<parallel>, #tpu.dimension_semantics<arbitrary>], iteration_bounds = array<i64: 1, 8>, scalar_prefetch = 0 : i64, scratch_operands = 1 : i64, tpu.core_type = #tpu.core_type<tc>, window_params = [{transform_indices = @transform_0, window_bounds = array<i64: 2, 256, 16>}, {transform_indices = @transform_1, window_bounds = array<i64: 256, 128>}, {pipeline_mode = #tpu.pipeline_mode<synchronous>, transform_indices = @transform_2, window_bounds = array<i64: 1, 128>}, {transform_indices = @transform_3, window_bounds = array<i64: 2, 128>}]} {
    %c0_i32 = arith.constant 0 : i32
    %0 = arith.cmpi eq, %arg1, %c0_i32 : i32
    %1 = arith.extui %0 : i1 to i32
    %c0_i32_0 = arith.constant 0 : i32
    %2 = arith.cmpi ne, %1, %c0_i32_0 : i32
    scf.if %2 {
      %cst_11 = arith.constant 0.000000e+00 : f32
      %13 = vector.broadcast %cst_11 : f32 to vector<2x128xf32>
      %c0_12 = arith.constant 0 : index
      %c0_13 = arith.constant 0 : index
      %14 = vector.load %arg6[%c0_12, %c0_13] : memref<2x128xf32, #tpu.memory_space<vmem>>, vector<2x128xf32>
      tpu.vector_store %arg6[%c0_12, %c0_13], %13 {strides = array<i32>} : memref<2x128xf32, #tpu.memory_space<vmem>>, vector<2x128xf32>,
    } else {
    }
    %c0 = arith.constant 0 : index
    %c0_1 = arith.constant 0 : index
    %c0_2 = arith.constant 0 : index
    %3 = vector.load %arg2[%c0, %c0_1, %c0_2] : memref<2x256x16xf32, #tpu.memory_space<vmem>>, vector<2x256x16xf32>
    %cst = arith.constant dense<0.000000e+00> : vector<2x256xf32>
    %4 = vector.multi_reduction <add>, %3, %cst [2] : vector<2x256x16xf32> to vector<2x256xf32>
    %c0_3 = arith.constant 0 : index
    %c0_4 = arith.constant 0 : index
    %5 = vector.load %arg6[%c0_3, %c0_4] : memref<2x128xf32, #tpu.memory_space<vmem>>, vector<2x128xf32>
    %c0_5 = arith.constant 0 : index
    %c0_6 = arith.constant 0 : index
    %6 = vector.load %arg3[%c0_5, %c0_6] : memref<256x128xf32, #tpu.memory_space<vmem>>, vector<256x128xf32>
    %cst_7 = arith.constant dense<0.000000e+00> : vector<2x128xf32>
    %7 = tpu.matmul %4, %6, %cst_7 {dimension_numbers = #tpu.dot_dimension_numbers<[1], [0], [0], [1], [0, 0, 1, 1], [], []>} : vector<2x256xf32>, vector<256x128xf32>, vector<2x128xf32> -> vector<2x128xf32>
    %8 = arith.addf %5, %7 : vector<2x128xf32>
    %c0_8 = arith.constant 0 : index
    %c0_9 = arith.constant 0 : index
    %9 = vector.load %arg6[%c0_8, %c0_9] : memref<2x128xf32, #tpu.memory_space<vmem>>, vector<2x128xf32>
    tpu.vector_store %arg6[%c0_8, %c0_9], %8 {strides = array<i32>} : memref<2x128xf32, #tpu.memory_space<vmem>>, vector<2x128xf32>,
    %c7_i32 = arith.constant 7 : i32
    %10 = arith.cmpi eq, %arg1, %c7_i32 : i32
    %11 = arith.extui %10 : i1 to i32
    %c0_i32_10 = arith.constant 0 : i32
    %12 = arith.cmpi ne, %11, %c0_i32_10 : i32
    scf.if %12 {
      %c0_11 = arith.constant 0 : index
      %c0_12 = arith.constant 0 : index
      %13 = vector.load %arg6[%c0_11, %c0_12] : memref<2x128xf32, #tpu.memory_space<vmem>>, vector<2x128xf32>
      %cst_13 = arith.constant 6.250000e-02 : f32
      %14 = vector.broadcast %cst_13 : f32 to vector<2x128xf32>
      %15 = arith.mulf %13, %14 : vector<2x128xf32>
      %c0_14 = arith.constant 0 : index
      %c0_15 = arith.constant 0 : index
      %16 = vector.load %arg4[%c0_14, %c0_15] : memref<1x128xf32, #tpu.memory_space<vmem>>, vector<1x128xf32>
      %17 = vector.broadcast %16 : vector<1x128xf32> to vector<2x128xf32>
      %18 = arith.addf %15, %17 : vector<2x128xf32>
      %c0_16 = arith.constant 0 : index
      %c0_17 = arith.constant 0 : index
      %19 = vector.load %arg5[%c0_16, %c0_17] : memref<2x128xf32, #tpu.memory_space<vmem>>, vector<2x128xf32>
      tpu.vector_store %arg5[%c0_16, %c0_17], %18 {strides = array<i32>} : memref<2x128xf32, #tpu.memory_space<vmem>>, vector<2x128xf32>,
    } else {
    }
    return
  }
  func.func @transform_0(%arg0: i32, %arg1: i32) -> (i32, i32, i32) {
    %c0_i32 = arith.constant 0 : i32
    %c0_i32_0 = arith.constant 0 : i32
    return %arg0, %arg1, %c0_i32 : i32, i32, i32
  }
  func.func @transform_1(%arg0: i32, %arg1: i32) -> (i32, i32) {
    %c0_i32 = arith.constant 0 : i32
    %c0_i32_0 = arith.constant 0 : i32
    return %arg1, %c0_i32 : i32, i32
  }
  func.func @transform_2(%arg0: i32, %arg1: i32) -> (i32, i32) {
    %c0_i32 = arith.constant 0 : i32
    %c0_i32_0 = arith.constant 0 : i32
    %c0_i32_1 = arith.constant 0 : i32
    return %c0_i32, %c0_i32_0 : i32, i32
  }
  func.func @transform_3(%arg0: i32, %arg1: i32) -> (i32, i32) {
    %c0_i32 = arith.constant 0 : i32
    %c0_i32_0 = arith.constant 0 : i32
    return %arg0, %c0_i32 : i32, i32
  }
}

</mosaic_0001>

<llo_original>
// kernel: tpu_custom_call.1
$region0: #{tpu_custom_call.1}
  #allocation0 [shape = 'u32[]', space=smem, size = 0x4, offset = 0x4, fixed_abs, tag = 'smem constant byte address 0x4 - core index']
  #allocation1 [shape = 'u32[144,128]{1,0:T(1,128)}', space=vmem, size = 0x12000, scoped, tag = 'internal scratch']
  #allocation2 [shape = 'f32[2,128]{1,0:T(2,128)}', space=vmem, size = 0x400, scoped, tag = 'scratch operand']
  %s0 = inlined_call_operand.vmem [shape: f32[2,2048,16], index: 0, kind: input, shape index: {}]
  %s1 = inlined_call_operand.vmem [shape: f32[2048,128], index: 1, kind: input, shape index: {}]
  %s2 = inlined_call_operand.vmem [shape: f32[1,128], index: 2, kind: input, shape index: {}]
  %s3 = inlined_call_operand.hbm [shape: f32[2,128], index: 3, kind: output, shape index: {}]
  %s4 = sld [smem:[#allocation0]]
  $region91: #{tpu_custom_call.1} parent=0
    _
  %s6 = ssub.s32 1, %s4
  %s7 = scalar_select 0, %s6, %s4
  $region1: #{tpu_custom_call.1} parent=0
    #allocation3 [shape = 'u8[524288]{0}', space=vmem, size = 0x80000, scoped, tag = 'input window, operand 0']
    #allocation4 [shape = 'u8[1024]{0}', space=vmem, size = 0x400, scoped, tag = 'output window, operand 0, single buffered']
    #allocation5 [shape = 's32[2]{0}', space=sflag, size = 0x8, scoped, tag = 'scoped memory for tpu_custom_call.1']
    %8 = vsyncpa [#allocation5], 0
    loop: start=0, step=1, limit=10
    $region2: #{tpu_custom_call.1} parent=1 // loop_pre_header
      _
    $region3: #{tpu_custom_call.1} parent=1 // loop_header
      %s10 = sphi 0, %s14
      %p11 = scmp.ge.s32.totalorder %s10, 10
      %s17 = sphi 0, %s29
      %s18 = sphi 0, %s25
      %s19 = sphi 0, %s17
      %s20 = sphi 0, %s18
      %s21 = sphi 0, %s19
      %s22 = sphi 0, %s20
      %s34 = sphi 0, %s36
      %s37 = sphi 0, %s34
      %s38 = sphi 0, %s37
      %s54 = sphi 0, %s38
      %s60 = sphi 0, %s62
      %s63 = sphi 0, %s60
      %s64 = sphi 0, %s63
      %s80 = sphi 0, %s64
      %s84 = sphi 0, %s84
      %s86 = sphi 0, %s84
      %s87 = sphi 0, %s86
      %s101 = sphi 0, %s87
      %s107 = sphi 0, %s109
      %s110 = sphi 0, %s107
      %s111 = sphi 0, %s110
      %s127 = sphi 0, %s111
    $region4: #{tpu_custom_call.1} parent=1 // loop_header_branch
      %13 = sbr.rel (%p11) target = $region8
    $region5: #{tpu_custom_call.1} parent=1 // loop_body
      %s15 = ssub.s32 %s10, 1
      %s16 = ssub.s32 %s10, 2
      %s23 = sadd.s32 1, %s18
      %p24 = scmp.ge.s32.totalorder %s23, 8
      %s25 = scalar_select %p24, 0, %s23
      %s26 = sadd.s32 1, %s17
      %s27 = scalar_select %p24, %s26, %s17
      %p28 = scmp.ge.s32.totalorder %s27, 1
      %s29 = scalar_select %p28, 0, %s27
      %s30 = ssub.s32 %s17, %s29
      %s31 = ssub.s32 %s18, %s25
      %s32 = sor.u32 %s30, %s31
      %p33 = scmp.eq.s32.totalorder %s32, 0
      %s35 = sadd.s32 %s34, 1
      %s36 = scalar_select %p33, %s34, %s35
      %p39 = pneg %p33
      %p40 = scmp.eq.s32.totalorder %s10, 7
      %p41 = por %p39, %p40
      %p42 = scmp.ne.s32.totalorder %s34, %s37
      %p43 = scmp.eq.s32.totalorder %s10, 0
      %p44 = por %p42, %p43
      %p45 = scmp.ne.s32.totalorder %s34, %s37
      %p46 = scmp.eq.s32.totalorder %s15, 7
      %p47 = por %p45, %p46
      %p48 = scmp.ne.s32.totalorder %s37, %s38
      %p49 = scmp.eq.s32.totalorder %s15, 0
      %p50 = por %p48, %p49
      %p51 = scmp.ne.s32.totalorder %s37, %s38
      %p52 = scmp.eq.s32.totalorder %s16, 7
      %p53 = por %p51, %p52
      %p55 = scmp.ne.s32.totalorder %s38, %s54
      %p56 = scmp.eq.s32.totalorder %s16, 0
      %p57 = por %p55, %p56
      %s58 = ssub.s32 %s18, %s25
      %p59 = scmp.eq.s32.totalorder %s58, 0
      %s61 = sadd.s32 %s60, 1
      %s62 = scalar_select %p59, %s60, %s61
      %p65 = pneg %p59
      %p66 = scmp.eq.s32.totalorder %s10, 7
      %p67 = por %p65, %p66
      %p68 = scmp.ne.s32.totalorder %s60, %s63
      %p69 = scmp.eq.s32.totalorder %s10, 0
      %p70 = por %p68, %p69
      %p71 = scmp.ne.s32.totalorder %s60, %s63
      %p72 = scmp.eq.s32.totalorder %s15, 7
      %p73 = por %p71, %p72
      %p74 = scmp.ne.s32.totalorder %s63, %s64
      %p75 = scmp.eq.s32.totalorder %s15, 0
      %p76 = por %p74, %p75
      %p77 = scmp.ne.s32.totalorder %s63, %s64
      %p78 = scmp.eq.s32.totalorder %s16, 7
      %p79 = por %p77, %p78
      %p81 = scmp.ne.s32.totalorder %s64, %s80
      %p82 = scmp.eq.s32.totalorder %s16, 0
      %p83 = por %p81, %p82
      %s85 = sadd.s32 %s84, 1
      %p88 = scmp.eq.s32.totalorder %s10, 7
      %p89 = scmp.ne.s32.totalorder %s84, %s86
      %p90 = scmp.eq.s32.totalorder %s10, 0
      %p91 = por %p89, %p90
      %p92 = scmp.ne.s32.totalorder %s84, %s86
      %p93 = scmp.eq.s32.totalorder %s15, 7
      %p94 = por %p92, %p93
      %p95 = scmp.ne.s32.totalorder %s86, %s87
      %p96 = scmp.eq.s32.totalorder %s15, 0
      %p97 = por %p95, %p96
      %p98 = scmp.ne.s32.totalorder %s86, %s87
      %p99 = scmp.eq.s32.totalorder %s16, 7
      %p100 = por %p98, %p99
      %p102 = scmp.ne.s32.totalorder %s87, %s101
      %p103 = scmp.eq.s32.totalorder %s16, 0
      %p104 = por %p102, %p103
      %s105 = ssub.s32 %s17, %s29
      %p106 = scmp.eq.s32.totalorder %s105, 0
      %s108 = sadd.s32 %s107, 1
      %s109 = scalar_select %p106, %s107, %s108
      %p112 = pneg %p106
      %p113 = scmp.eq.s32.totalorder %s10, 7
      %p114 = por %p112, %p113
      %p115 = scmp.ne.s32.totalorder %s107, %s110
      %p116 = scmp.eq.s32.totalorder %s10, 0
      %p117 = por %p115, %p116
      %p118 = scmp.ne.s32.totalorder %s107, %s110
      %p119 = scmp.eq.s32.totalorder %s15, 7
      %p120 = por %p118, %p119
      %p121 = scmp.ne.s32.totalorder %s110, %s111
      %p122 = scmp.eq.s32.totalorder %s15, 0
      %p123 = por %p121, %p122
      %p124 = scmp.ne.s32.totalorder %s110, %s111
      %p125 = scmp.eq.s32.totalorder %s16, 7
      %p126 = por %p124, %p125
      %p128 = scmp.ne.s32.totalorder %s111, %s127
      %p129 = scmp.eq.s32.totalorder %s16, 0
      %p130 = por %p128, %p129
      %p131 = scmp.le.s32.totalorder 1, %s10
      %p132 = scmp.lt.s32.totalorder %s10, 9
      %p133 = pnand %p131, %p132
      %p134 = pneg %p133
      // Predicated region
      $region9: #{tpu_custom_call.1} parent=5 // pred_check
        _
      $region10: #{tpu_custom_call.1} parent=5 // pred_check_branch
        %136 = sbr.rel (%p133) target = $region12
      $region11: #{tpu_custom_call.1} parent=5 // pred_region
        %s137 = ssub.s32 %s10, 1
        // Predicated region
        $region13: #{tpu_custom_call.1} parent=11 // pred_check
          %p138 = pneg %p97
        $region14: #{tpu_custom_call.1} parent=11 // pred_check_branch
          %140 = sbr.rel (%p138) target = $region16
        $region15: #{tpu_custom_call.1} parent=11 // pred_region
          _
        $region16: #{tpu_custom_call.1} parent=11 // pred_fallthru
          _
      $region12: #{tpu_custom_call.1} parent=5 // pred_fallthru
        _
      %p141 = scmp.lt.s32.totalorder %s10, 8
      // Predicated region
      $region17: #{tpu_custom_call.1} parent=5 // pred_check
        %p142 = pneg %p141
      $region18: #{tpu_custom_call.1} parent=5 // pred_check_branch
        %144 = sbr.rel (%p142) target = $region20
      $region19: #{tpu_custom_call.1} parent=5 // pred_region
        // Predicated region
        $region21: #{tpu_custom_call.1} parent=19 // pred_check
          %p145 = pneg %p44
        $region22: #{tpu_custom_call.1} parent=19 // pred_check_branch
          %147 = sbr.rel (%p145) target = $region24
        $region23: #{tpu_custom_call.1} parent=19 // pred_region
          %s148 = sand.u32 %s34, 1
          %s149 = sand.u32 %s34, 1
          %s150 = smul.addr %s149, 512
          %s151 = scalar_lea.vmem [#allocation3], %s150
          %s152 = smul.u32 2, %s17
          %s153 = smul.u32 32, %s18
          %s154 = smul.addr %s152, 256
          %s155 = sadd.s32 %s153, %s154
          %s156 = smul.addr %s155, 8
          %s157 = scalar_lea.vmem %s0, %s156
          // Predicated region
          $region25: #{tpu_custom_call.1} parent=23 // pred_check
            _
          $region26: #{tpu_custom_call.1} parent=23 // pred_check_branch
            %159 = sbr.rel (0) target = $region28
          $region27: #{tpu_custom_call.1} parent=23 // pred_region
            // Predicated region
            $region29: #{tpu_custom_call.1} parent=27 // pred_check
              _
            $region30: #{tpu_custom_call.1} parent=27 // pred_check_branch
              %161 = sbr.rel (0) target = $region32
            $region31: #{tpu_custom_call.1} parent=27 // pred_region
              // Predicated region
              $region44: #{tpu_custom_call.1} parent=31 // pred_check
                _
              $region45: #{tpu_custom_call.1} parent=31 // pred_check_branch
                %302 = sbr.rel (0) target = $region47
              $region46: #{tpu_custom_call.1} parent=31 // pred_region
                loop: start=0, step=1, limit=1
                $region48: #{tpu_custom_call.1} parent=46 // loop_pre_header
                  _
                $region49: #{tpu_custom_call.1} parent=46 // loop_header
                  %s304 = sphi 0, %s308
                  %p305 = scmp.ge.s32.totalorder %s304, 1
                  %s309 = sphi %s157, %s157
                  %s310 = sphi %s151, %s151
                $region50: #{tpu_custom_call.1} parent=46 // loop_header_branch
                  %307 = sbr.rel (%p305) target = $region54
                $region51: #{tpu_custom_call.1} parent=46 // loop_body
                  %v311 = vld [vmem:[%s309] sm:$0xff]
                  %312 = vst [vmem:[%s310] sm:$0xff] %v311
                  %v313 = vld [vmem:[%s309 + $0x8] sm:$0xff]
                  %314 = vst [vmem:[%s310 + $0x8] sm:$0xff] %v313
                  %v315 = vld [vmem:[%s309 + $0x10] sm:$0xff]
                  %316 = vst [vmem:[%s310 + $0x10] sm:$0xff] %v315
                  %v317 = vld [vmem:[%s309 + $0x18] sm:$0xff]
                  %318 = vst [vmem:[%s310 + $0x18] sm:$0xff] %v317
                  %v319 = vld [vmem:[%s309 + $0x20] sm:$0xff]
                  %320 = vst [vmem:[%s310 + $0x20] sm:$0xff] %v319
                  %v321 = vld [vmem:[%s309 + $0x28] sm:$0xff]
                  %322 = vst [vmem:[%s310 + $0x28] sm:$0xff] %v321
                  %v323 = vld [vmem:[%s309 + $0x30] sm:$0xff]
                  %324 = vst [vmem:[%s310 + $0x30] sm:$0xff] %v323
                  %v325 = vld [vmem:[%s309 + $0x38] sm:$0xff]
                  %326 = vst [vmem:[%s310 + $0x38] sm:$0xff] %v325
                  %v327 = vld [vmem:[%s309 + $0x40] sm:$0xff]
                  %328 = vst [vmem:[%s310 + $0x40] sm:$0xff] %v327
                  %v329 = vld [vmem:[%s309 + $0x48] sm:$0xff]
                  %330 = vst [vmem:[%s310 + $0x48] sm:$0xff] %v329
                  %v331 = vld [vmem:[%s309 + $0x50] sm:$0xff]
                  %332 = vst [vmem:[%s310 + $0x50] sm:$0xff] %v331
                  %v333 = vld [vmem:[%s309 + $0x58] sm:$0xff]
                  %334 = vst [vmem:[%s310 + $0x58] sm:$0xff] %v333
                  %v335 = vld [vmem:[%s309 + $0x60] sm:$0xff]
                  %336 = vst [vmem:[%s310 + $0x60] sm:$0xff] %v335
                  %v337 = vld [vmem:[%s309 + $0x68] sm:$0xff]
                  %338 = vst [vmem:[%s310 + $0x68] sm:$0xff] %v337
                  %v339 = vld [vmem:[%s309 + $0x70] sm:$0xff]
                  %340 = vst [vmem:[%s310 + $0x70] sm:$0xff] %v339
                  %v341 = vld [vmem:[%s309 + $0x78] sm:$0xff]
                  %342 = vst [vmem:[%s310 + $0x78] sm:$0xff] %v341
                  %v343 = vld [vmem:[%s309 + $0x80] sm:$0xff]
                  %344 = vst [vmem:[%s310 + $0x80] sm:$0xff] %v343
                  %v345 = vld [vmem:[%s309 + $0x88] sm:$0xff]
                  %346 = vst [vmem:[%s310 + $0x88] sm:$0xff] %v345
                  %v347 = vld [vmem:[%s309 + $0x90] sm:$0xff]
                  %348 = vst [vmem:[%s310 + $0x90] sm:$0xff] %v347
                  %v349 = vld [vmem:[%s309 + $0x98] sm:$0xff]
                  %350 = vst [vmem:[%s310 + $0x98] sm:$0xff] %v349
                  %v351 = vld [vmem:[%s309 + $0xa0] sm:$0xff]
                  %352 = vst [vmem:[%s310 + $0xa0] sm:$0xff] %v351
                  %v353 = vld [vmem:[%s309 + $0xa8] sm:$0xff]
                  %354 = vst [vmem:[%s310 + $0xa8] sm:$0xff] %v353
                  %v355 = vld [vmem:[%s309 + $0xb0] sm:$0xff]
                  %356 = vst [vmem:[%s310 + $0xb0] sm:$0xff] %v355
                  %v357 = vld [vmem:[%s309 + $0xb8] sm:$0xff]
                  %358 = vst [vmem:[%s310 + $0xb8] sm:$0xff] %v357
                  %v359 = vld [vmem:[%s309 + $0xc0] sm:$0xff]
                  %360 = vst [vmem:[%s310 + $0xc0] sm:$0xff] %v359
                  %v361 = vld [vmem:[%s309 + $0xc8] sm:$0xff]
                  %362 = vst [vmem:[%s310 + $0xc8] sm:$0xff] %v361
                  %v363 = vld [vmem:[%s309 + $0xd0] sm:$0xff]
                  %364 = vst [vmem:[%s310 + $0xd0] sm:$0xff] %v363
                  %v365 = vld [vmem:[%s309 + $0xd8] sm:$0xff]
                  %366 = vst [vmem:[%s310 + $0xd8] sm:$0xff] %v365
                  %v367 = vld [vmem:[%s309 + $0xe0] sm:$0xff]
                  %368 = vst [vmem:[%s310 + $0xe0] sm:$0xff] %v367
                  %v369 = vld [vmem:[%s309 + $0xe8] sm:$0xff]
                  %370 = vst [vmem:[%s310 + $0xe8] sm:$0xff] %v369
                  %v371 = vld [vmem:[%s309 + $0xf0] sm:$0xff]
                  %372 = vst [vmem:[%s310 + $0xf0] sm:$0xff] %v371
                  %v373 = vld [vmem:[%s309 + $0xf8] sm:$0xff]
                  %374 = vst [vmem:[%s310 + $0xf8] sm:$0xff] %v373
                  %v375 = vld [vmem:[%s309 + $0x800] sm:$0xff]
                  %376 = vst [vmem:[%s310 + $0x100] sm:$0xff] %v375
                  %v377 = vld [vmem:[%s309 + $0x808] sm:$0xff]
                  %378 = vst [vmem:[%s310 + $0x108] sm:$0xff] %v377
                  %v379 = vld [vmem:[%s309 + $0x810] sm:$0xff]
                  %380 = vst [vmem:[%s310 + $0x110] sm:$0xff] %v379
                  %v381 = vld [vmem:[%s309 + $0x818] sm:$0xff]
                  %382 = vst [vmem:[%s310 + $0x118] sm:$0xff] %v381
                  %v383 = vld [vmem:[%s309 + $0x820] sm:$0xff]
                  %384 = vst [vmem:[%s310 + $0x120] sm:$0xff] %v383
                  %v385 = vld [vmem:[%s309 + $0x828] sm:$0xff]
                  %386 = vst [vmem:[%s310 + $0x128] sm:$0xff] %v385
                  %v387 = vld [vmem:[%s309 + $0x830] sm:$0xff]
                  %388 = vst [vmem:[%s310 + $0x130] sm:$0xff] %v387
                  %v389 = vld [vmem:[%s309 + $0x838] sm:$0xff]
                  %390 = vst [vmem:[%s310 + $0x138] sm:$0xff] %v389
                  %v391 = vld [vmem:[%s309 + $0x840] sm:$0xff]
                  %392 = vst [vmem:[%s310 + $0x140] sm:$0xff] %v391
                  %v393 = vld [vmem:[%s309 + $0x848] sm:$0xff]
                  %394 = vst [vmem:[%s310 + $0x148] sm:$0xff] %v393
                  %v395 = vld [vmem:[%s309 + $0x850] sm:$0xff]
                  %396 = vst [vmem:[%s310 + $0x150] sm:$0xff] %v395
                  %v397 = vld [vmem:[%s309 + $0x858] sm:$0xff]
                  %398 = vst [vmem:[%s310 + $0x158] sm:$0xff] %v397
                  %v399 = vld [vmem:[%s309 + $0x860] sm:$0xff]
                  %400 = vst [vmem:[%s310 + $0x160] sm:$0xff] %v399
                  %v401 = vld [vmem:[%s309 + $0x868] sm:$0xff]
                  %402 = vst [vmem:[%s310 + $0x168] sm:$0xff] %v401
                  %v403 = vld [vmem:[%s309 + $0x870] sm:$0xff]
                  %404 = vst [vmem:[%s310 + $0x170] sm:$0xff] %v403
                  %v405 = vld [vmem:[%s309 + $0x878] sm:$0xff]
                  %406 = vst [vmem:[%s310 + $0x178] sm:$0xff] %v405
                  %v407 = vld [vmem:[%s309 + $0x880] sm:$0xff]
                  %408 = vst [vmem:[%s310 + $0x180] sm:$0xff] %v407
                  %v409 = vld [vmem:[%s309 + $0x888] sm:$0xff]
                  %410 = vst [vmem:[%s310 + $0x188] sm:$0xff] %v409
                  %v411 = vld [vmem:[%s309 + $0x890] sm:$0xff]
                  %412 = vst [vmem:[%s310 + $0x190] sm:$0xff] %v411
                  %v413 = vld [vmem:[%s309 + $0x898] sm:$0xff]
                  %414 = vst [vmem:[%s310 + $0x198] sm:$0xff] %v413
                  %v415 = vld [vmem:[%s309 + $0x8a0] sm:$0xff]
                  %416 = vst [vmem:[%s310 + $0x1a0] sm:$0xff] %v415
                  %v417 = vld [vmem:[%s309 + $0x8a8] sm:$0xff]
                  %418 = vst [vmem:[%s310 + $0x1a8] sm:$0xff] %v417
                  %v419 = vld [vmem:[%s309 + $0x8b0] sm:$0xff]
                  %420 = vst [vmem:[%s310 + $0x1b0] sm:$0xff] %v419
                  %v421 = vld [vmem:[%s309 + $0x8b8] sm:$0xff]
                  %422 = vst [vmem:[%s310 + $0x1b8] sm:$0xff] %v421
                  %v423 = vld [vmem:[%s309 + $0x8c0] sm:$0xff]
                  %424 = vst [vmem:[%s310 + $0x1c0] sm:$0xff] %v423
                  %v425 = vld [vmem:[%s309 + $0x8c8] sm:$0xff]
                  %426 = vst [vmem:[%s310 + $0x1c8] sm:$0xff] %v425
                  %v427 = vld [vmem:[%s309 + $0x8d0] sm:$0xff]
                  %428 = vst [vmem:[%s310 + $0x1d0] sm:$0xff] %v427
                  %v429 = vld [vmem:[%s309 + $0x8d8] sm:$0xff]
                  %430 = vst [vmem:[%s310 + $0x1d8] sm:$0xff] %v429
                  %v431 = vld [vmem:[%s309 + $0x8e0] sm:$0xff]
                  %432 = vst [vmem:[%s310 + $0x1e0] sm:$0xff] %v431
                  %v433 = vld [vmem:[%s309 + $0x8e8] sm:$0xff]
                  %434 = vst [vmem:[%s310 + $0x1e8] sm:$0xff] %v433
                  %v435 = vld [vmem:[%s309 + $0x8f0] sm:$0xff]
                  %436 = vst [vmem:[%s310 + $0x1f0] sm:$0xff] %v435
                  %v437 = vld [vmem:[%s309 + $0x8f8] sm:$0xff]
                  %438 = vst [vmem:[%s310 + $0x1f8] sm:$0xff] %v437
                $region52: #{tpu_custom_call.1} parent=46 // loop_footer
                  %s308 = sadd.s32 1, %s304
                $region53: #{tpu_custom_call.1} parent=46 // loop_footer_branch
                  %303 = sbr.rel target = $region49
                $region54: #{tpu_custom_call.1} parent=46 // loop_exit
                  _
              $region47: #{tpu_custom_call.1} parent=31 // pred_fallthru
                _
              // Predicated region
              $region55: #{tpu_custom_call.1} parent=31 // pred_check
                _
              $region56: #{tpu_custom_call.1} parent=31 // pred_check_branch
                %440 = sbr.rel target = $region58
              $region57: #{tpu_custom_call.1} parent=31 // pred_region
                _
              $region58: #{tpu_custom_call.1} parent=31 // pred_fallthru
                _
            $region32: #{tpu_custom_call.1} parent=27 // pred_fallthru
              _
            // Predicated region
            $region33: #{tpu_custom_call.1} parent=27 // pred_check
              _
            $region34: #{tpu_custom_call.1} parent=27 // pred_check_branch
              %163 = sbr.rel target = $region36
            $region35: #{tpu_custom_call.1} parent=27 // pred_region
              loop: start=0, step=1, limit=1
              $region37: #{tpu_custom_call.1} parent=35 // loop_pre_header
                _
              $region38: #{tpu_custom_call.1} parent=35 // loop_header
                %s166 = sphi 0, %s170
                %p167 = scmp.ge.s32.totalorder %s166, 1
                %s171 = sphi %s157, %s157
                %s172 = sphi %s151, %s151
              $region39: #{tpu_custom_call.1} parent=35 // loop_header_branch
                %169 = sbr.rel (%p167) target = $region43
              $region40: #{tpu_custom_call.1} parent=35 // loop_body
                %v173 = vld [vmem:[%s171] sm:$0xff]
                %174 = vst [vmem:[%s172] sm:$0xff] %v173
                %v175 = vld [vmem:[%s171 + $0x8] sm:$0xff]
                %176 = vst [vmem:[%s172 + $0x8] sm:$0xff] %v175
                %v177 = vld [vmem:[%s171 + $0x10] sm:$0xff]
                %178 = vst [vmem:[%s172 + $0x10] sm:$0xff] %v177
                %v179 = vld [vmem:[%s171 + $0x18] sm:$0xff]
                %180 = vst [vmem:[%s172 + $0x18] sm:$0xff] %v179
                %v181 = vld [vmem:[%s171 + $0x20] sm:$0xff]
                %182 = vst [vmem:[%s172 + $0x20] sm:$0xff] %v181
                %v183 = vld [vmem:[%s171 + $0x28] sm:$0xff]
                %184 = vst [vmem:[%s172 + $0x28] sm:$0xff] %v183
                %v185 = vld [vmem:[%s171 + $0x30] sm:$0xff]
                %186 = vst [vmem:[%s172 + $0x30] sm:$0xff] %v185
                %v187 = vld [vmem:[%s171 + $0x38] sm:$0xff]
                %188 = vst [vmem:[%s172 + $0x38] sm:$0xff] %v187
                %v189 = vld [vmem:[%s171 + $0x40] sm:$0xff]
                %190 = vst [vmem:[%s172 + $0x40] sm:$0xff] %v189
                %v191 = vld [vmem:[%s171 + $0x48] sm:$0xff]
                %192 = vst [vmem:[%s172 + $0x48] sm:$0xff] %v191
                %v193 = vld [vmem:[%s171 + $0x50] sm:$0xff]
                %194 = vst [vmem:[%s172 + $0x50] sm:$0xff] %v193
                %v195 = vld [vmem:[%s171 + $0x58] sm:$0xff]
                %196 = vst [vmem:[%s172 + $0x58] sm:$0xff] %v195
                %v197 = vld [vmem:[%s171 + $0x60] sm:$0xff]
                %198 = vst [vmem:[%s172 + $0x60] sm:$0xff] %v197
                %v199 = vld [vmem:[%s171 + $0x68] sm:$0xff]
                %200 = vst [vmem:[%s172 + $0x68] sm:$0xff] %v199
                %v201 = vld [vmem:[%s171 + $0x70] sm:$0xff]
                %202 = vst [vmem:[%s172 + $0x70] sm:$0xff] %v201
                %v203 = vld [vmem:[%s171 + $0x78] sm:$0xff]
                %204 = vst [vmem:[%s172 + $0x78] sm:$0xff] %v203
                %v205 = vld [vmem:[%s171 + $0x80] sm:$0xff]
                %206 = vst [vmem:[%s172 + $0x80] sm:$0xff] %v205
                %v207 = vld [vmem:[%s171 + $0x88] sm:$0xff]
                %208 = vst [vmem:[%s172 + $0x88] sm:$0xff] %v207
                %v209 = vld [vmem:[%s171 + $0x90] sm:$0xff]
                %210 = vst [vmem:[%s172 + $0x90] sm:$0xff] %v209
                %v211 = vld [vmem:[%s171 + $0x98] sm:$0xff]
                %212 = vst [vmem:[%s172 + $0x98] sm:$0xff] %v211
                %v213 = vld [vmem:[%s171 + $0xa0] sm:$0xff]
                %214 = vst [vmem:[%s172 + $0xa0] sm:$0xff] %v213
                %v215 = vld [vmem:[%s171 + $0xa8] sm:$0xff]
                %216 = vst [vmem:[%s172 + $0xa8] sm:$0xff] %v215
                %v217 = vld [vmem:[%s171 + $0xb0] sm:$0xff]
                %218 = vst [vmem:[%s172 + $0xb0] sm:$0xff] %v217
                %v219 = vld [vmem:[%s171 + $0xb8] sm:$0xff]
                %220 = vst [vmem:[%s172 + $0xb8] sm:$0xff] %v219
                %v221 = vld [vmem:[%s171 + $0xc0] sm:$0xff]
                %222 = vst [vmem:[%s172 + $0xc0] sm:$0xff] %v221
                %v223 = vld [vmem:[%s171 + $0xc8] sm:$0xff]
                %224 = vst [vmem:[%s172 + $0xc8] sm:$0xff] %v223
                %v225 = vld [vmem:[%s171 + $0xd0] sm:$0xff]
                %226 = vst [vmem:[%s172 + $0xd0] sm:$0xff] %v225
                %v227 = vld [vmem:[%s171 + $0xd8] sm:$0xff]
                %228 = vst [vmem:[%s172 + $0xd8] sm:$0xff] %v227
                %v229 = vld [vmem:[%s171 + $0xe0] sm:$0xff]
                %230 = vst [vmem:[%s172 + $0xe0] sm:$0xff] %v229
                %v231 = vld [vmem:[%s171 + $0xe8] sm:$0xff]
                %232 = vst [vmem:[%s172 + $0xe8] sm:$0xff] %v231
                %v233 = vld [vmem:[%s171 + $0xf0] sm:$0xff]
                %234 = vst [vmem:[%s172 + $0xf0] sm:$0xff] %v233
                %v235 = vld [vmem:[%s171 + $0xf8] sm:$0xff]
                %236 = vst [vmem:[%s172 + $0xf8] sm:$0xff] %v235
                %v237 = vld [vmem:[%s171 + $0x800] sm:$0xff]
                %238 = vst [vmem:[%s172 + $0x100] sm:$0xff] %v237
                %v239 = vld [vmem:[%s171 + $0x808] sm:$0xff]
                %240 = vst [vmem:[%s172 + $0x108] sm:$0xff] %v239
                %v241 = vld [vmem:[%s171 + $0x810] sm:$0xff]
                %242 = vst [vmem:[%s172 + $0x110] sm:$0xff] %v241
                %v243 = vld [vmem:[%s171 + $0x818] sm:$0xff]
                %244 = vst [vmem:[%s172 + $0x118] sm:$0xff] %v243
                %v245 = vld [vmem:[%s171 + $0x820] sm:$0xff]
                %246 = vst [vmem:[%s172 + $0x120] sm:$0xff] %v245
                %v247 = vld [vmem:[%s171 + $0x828] sm:$0xff]
                %248 = vst [vmem:[%s172 + $0x128] sm:$0xff] %v247
                %v249 = vld [vmem:[%s171 + $0x830] sm:$0xff]
                %250 = vst [vmem:[%s172 + $0x130] sm:$0xff] %v249
                %v251 = vld [vmem:[%s171 + $0x838] sm:$0xff]
                %252 = vst [vmem:[%s172 + $0x138] sm:$0xff] %v251
                %v253 = vld [vmem:[%s171 + $0x840] sm:$0xff]
                %254 = vst [vmem:[%s172 + $0x140] sm:$0xff] %v253
                %v255 = vld [vmem:[%s171 + $0x848] sm:$0xff]
                %256 = vst [vmem:[%s172 + $0x148] sm:$0xff] %v255
                %v257 = vld [vmem:[%s171 + $0x850] sm:$0xff]
                %258 = vst [vmem:[%s172 + $0x150] sm:$0xff] %v257
                %v259 = vld [vmem:[%s171 + $0x858] sm:$0xff]
                %260 = vst [vmem:[%s172 + $0x158] sm:$0xff] %v259
                %v261 = vld [vmem:[%s171 + $0x860] sm:$0xff]
                %262 = vst [vmem:[%s172 + $0x160] sm:$0xff] %v261
                %v263 = vld [vmem:[%s171 + $0x868] sm:$0xff]
                %264 = vst [vmem:[%s172 + $0x168] sm:$0xff] %v263
                %v265 = vld [vmem:[%s171 + $0x870] sm:$0xff]
                %266 = vst [vmem:[%s172 + $0x170] sm:$0xff] %v265
                %v267 = vld [vmem:[%s171 + $0x878] sm:$0xff]
                %268 = vst [vmem:[%s172 + $0x178] sm:$0xff] %v267
                %v269 = vld [vmem:[%s171 + $0x880] sm:$0xff]
                %270 = vst [vmem:[%s172 + $0x180] sm:$0xff] %v269
                %v271 = vld [vmem:[%s171 + $0x888] sm:$0xff]
                %272 = vst [vmem:[%s172 + $0x188] sm:$0xff] %v271
                %v273 = vld [vmem:[%s171 + $0x890] sm:$0xff]
                %274 = vst [vmem:[%s172 + $0x190] sm:$0xff] %v273
                %v275 = vld [vmem:[%s171 + $0x898] sm:$0xff]
                %276 = vst [vmem:[%s172 + $0x198] sm:$0xff] %v275
                %v277 = vld [vmem:[%s171 + $0x8a0] sm:$0xff]
                %278 = vst [vmem:[%s172 + $0x1a0] sm:$0xff] %v277
                %v279 = vld [vmem:[%s171 + $0x8a8] sm:$0xff]
                %280 = vst [vmem:[%s172 + $0x1a8] sm:$0xff] %v279
                %v281 = vld [vmem:[%s171 + $0x8b0] sm:$0xff]
                %282 = vst [vmem:[%s172 + $0x1b0] sm:$0xff] %v281
                %v283 = vld [vmem:[%s171 + $0x8b8] sm:$0xff]
                %284 = vst [vmem:[%s172 + $0x1b8] sm:$0xff] %v283
                %v285 = vld [vmem:[%s171 + $0x8c0] sm:$0xff]
                %286 = vst [vmem:[%s172 + $0x1c0] sm:$0xff] %v285
                %v287 = vld [vmem:[%s171 + $0x8c8] sm:$0xff]
                %288 = vst [vmem:[%s172 + $0x1c8] sm:$0xff] %v287
                %v289 = vld [vmem:[%s171 + $0x8d0] sm:$0xff]
                %290 = vst [vmem:[%s172 + $0x1d0] sm:$0xff] %v289
                %v291 = vld [vmem:[%s171 + $0x8d8] sm:$0xff]
                %292 = vst [vmem:[%s172 + $0x1d8] sm:$0xff] %v291
                %v293 = vld [vmem:[%s171 + $0x8e0] sm:$0xff]
                %294 = vst [vmem:[%s172 + $0x1e0] sm:$0xff] %v293
                %v295 = vld [vmem:[%s171 + $0x8e8] sm:$0xff]
                %296 = vst [vmem:[%s172 + $0x1e8] sm:$0xff] %v295
                %v297 = vld [vmem:[%s171 + $0x8f0] sm:$0xff]
                %298 = vst [vmem:[%s172 + $0x1f0] sm:$0xff] %v297
                %v299 = vld [vmem:[%s171 + $0x8f8] sm:$0xff]
                %300 = vst [vmem:[%s172 + $0x1f8] sm:$0xff] %v299
              $region41: #{tpu_custom_call.1} parent=35 // loop_footer
                %s170 = sadd.s32 1, %s166
              $region42: #{tpu_custom_call.1} parent=35 // loop_footer_branch
                %165 = sbr.rel target = $region38
              $region43: #{tpu_custom_call.1} parent=35 // loop_exit
                _
            $region36: #{tpu_custom_call.1} parent=27 // pred_fallthru
              _
          $region28: #{tpu_custom_call.1} parent=23 // pred_fallthru
            _
          %441 = vnop
        $region24: #{tpu_custom_call.1} parent=19 // pred_fallthru
          _
        // Predicated region
        $region59: #{tpu_custom_call.1} parent=19 // pred_check
          %p442 = pneg %p70
        $region60: #{tpu_custom_call.1} parent=19 // pred_check_branch
          %444 = sbr.rel (%p442) target = $region62
        $region61: #{tpu_custom_call.1} parent=19 // pred_region
          %s445 = smul.u32 32, %s18
          %p446 = scmp.lt.s32.totalorder %s445, 255
          %s447 = scalar_select %p446, %s445, 255
          %s448 = smul.addr %s447, 8
          %s449 = scalar_lea.vmem %s1, %s448
          %s450 = smul.u32 32, %s18
        $region62: #{tpu_custom_call.1} parent=19 // pred_fallthru
          _
      $region20: #{tpu_custom_call.1} parent=5 // pred_fallthru
        _
      %p451 = scmp.le.s32.totalorder 1, %s10
      %p452 = scmp.lt.s32.totalorder %s10, 9
      %p453 = pnand %p451, %p452
      %p454 = pneg %p453
      // Predicated region
      $region63: #{tpu_custom_call.1} parent=5 // pred_check
        _
      $region64: #{tpu_custom_call.1} parent=5 // pred_check_branch
        %456 = sbr.rel (%p453) target = $region66
      $region65: #{tpu_custom_call.1} parent=5 // pred_region
        %s457 = ssub.s32 %s10, 1
        %s458 = sand.u32 %s37, 1
        %s459 = sand.u32 %s37, 1
        %s460 = smul.addr %s459, 512
        %s461 = scalar_lea.vmem [#allocation3], %s460
        // Predicated region
        $region67: #{tpu_custom_call.1} parent=65 // pred_check
          %p462 = pneg %p50
        $region68: #{tpu_custom_call.1} parent=65 // pred_check_branch
          %464 = sbr.rel (%p462) target = $region70
        $region69: #{tpu_custom_call.1} parent=65 // pred_region
          _
        $region70: #{tpu_custom_call.1} parent=65 // pred_fallthru
          _
        %s465 = sand.u32 %s37, 1
        %s466 = sand.u32 %s37, 1
        %s467 = smul.addr %s466, 512
        %s468 = scalar_lea.vmem [#allocation3], %s467
        %p469 = pneg %p50
        %p470 = pneg %p47
        %s471 = smul.u32 32, %s20
        %p472 = scmp.lt.s32.totalorder %s471, 255
        %s473 = scalar_select %p472, %s471, 255
        %s474 = smul.addr %s473, 8
        %s475 = scalar_lea.vmem %s1, %s474
        %p476 = pneg %p76
        %p477 = pneg %p73
        %p478 = pneg %p97
        %p479 = pneg %p94
        %p480 = pneg %p123
        %p481 = pneg %p120
        %s482 = smul.u32 2, %s19
        %s483 = smul.u32 32, %s20
        %s484 = smul.u32 32, %s20
        %p485 = scmp.lt.s32.totalorder %s484, 255
        %s486 = scalar_select %p485, %s484, 255
        %s487 = smul.addr %s486, 8
        %s488 = scalar_lea.vmem %s1, %s487
        %s489 = smul.u32 32, %s20
        %p490 = scmp.eq.s32.totalorder %s20, 0
        // Predicated region
        $region71: #{tpu_custom_call.1} parent=65 // pred_check
          %p491 = pneg %p490
        $region72: #{tpu_custom_call.1} parent=65 // pred_check_branch
          %493 = sbr.rel (%p491) target = $region74
        $region73: #{tpu_custom_call.1} parent=65 // pred_region
          %494 = vst [vmem:[#allocation2] sm:$0x3] 0.0
        $region74: #{tpu_custom_call.1} parent=65 // pred_fallthru
          _
        %v495 = vld [vmem:[%s461] sm:$0xff]
        %v496 = vld [vmem:[%s461 + $0x8] sm:$0xff]
        %v497 = vld [vmem:[%s461 + $0x10] sm:$0xff]
        %v498 = vld [vmem:[%s461 + $0x18] sm:$0xff]
        %v499 = vld [vmem:[%s461 + $0x20] sm:$0xff]
        %v500 = vld [vmem:[%s461 + $0x28] sm:$0xff]
        %v501 = vld [vmem:[%s461 + $0x30] sm:$0xff]
        %v502 = vld [vmem:[%s461 + $0x38] sm:$0xff]
        %v503 = vld [vmem:[%s461 + $0x40] sm:$0xff]
        %v504 = vld [vmem:[%s461 + $0x48] sm:$0xff]
        %v505 = vld [vmem:[%s461 + $0x50] sm:$0xff]
        %v506 = vld [vmem:[%s461 + $0x58] sm:$0xff]
        %v507 = vld [vmem:[%s461 + $0x60] sm:$0xff]
        %v508 = vld [vmem:[%s461 + $0x68] sm:$0xff]
        %v509 = vld [vmem:[%s461 + $0x70] sm:$0xff]
        %v510 = vld [vmem:[%s461 + $0x78] sm:$0xff]
        %v511 = vld [vmem:[%s461 + $0x80] sm:$0xff]
        %v512 = vld [vmem:[%s461 + $0x88] sm:$0xff]
        %v513 = vld [vmem:[%s461 + $0x90] sm:$0xff]
        %v514 = vld [vmem:[%s461 + $0x98] sm:$0xff]
        %v515 = vld [vmem:[%s461 + $0xa0] sm:$0xff]
        %v516 = vld [vmem:[%s461 + $0xa8] sm:$0xff]
        %v517 = vld [vmem:[%s461 + $0xb0] sm:$0xff]
        %v518 = vld [vmem:[%s461 + $0xb8] sm:$0xff]
        %v519 = vld [vmem:[%s461 + $0xc0] sm:$0xff]
        %v520 = vld [vmem:[%s461 + $0xc8] sm:$0xff]
        %v521 = vld [vmem:[%s461 + $0xd0] sm:$0xff]
        %v522 = vld [vmem:[%s461 + $0xd8] sm:$0xff]
        %v523 = vld [vmem:[%s461 + $0xe0] sm:$0xff]
        %v524 = vld [vmem:[%s461 + $0xe8] sm:$0xff]
        %v525 = vld [vmem:[%s461 + $0xf0] sm:$0xff]
        %v526 = vld [vmem:[%s461 + $0xf8] sm:$0xff]
        %v527 = vld [vmem:[%s461 + $0x100] sm:$0xff]
        %v528 = vld [vmem:[%s461 + $0x108] sm:$0xff]
        %v529 = vld [vmem:[%s461 + $0x110] sm:$0xff]
        %v530 = vld [vmem:[%s461 + $0x118] sm:$0xff]
        %v531 = vld [vmem:[%s461 + $0x120] sm:$0xff]
        %v532 = vld [vmem:[%s461 + $0x128] sm:$0xff]
        %v533 = vld [vmem:[%s461 + $0x130] sm:$0xff]
        %v534 = vld [vmem:[%s461 + $0x138] sm:$0xff]
        %v535 = vld [vmem:[%s461 + $0x140] sm:$0xff]
        %v536 = vld [vmem:[%s461 + $0x148] sm:$0xff]
        %v537 = vld [vmem:[%s461 + $0x150] sm:$0xff]
        %v538 = vld [vmem:[%s461 + $0x158] sm:$0xff]
        %v539 = vld [vmem:[%s461 + $0x160] sm:$0xff]
        %v540 = vld [vmem:[%s461 + $0x168] sm:$0xff]
        %v541 = vld [vmem:[%s461 + $0x170] sm:$0xff]
        %v542 = vld [vmem:[%s461 + $0x178] sm:$0xff]
        %v543 = vld [vmem:[%s461 + $0x180] sm:$0xff]
        %v544 = vld [vmem:[%s461 + $0x188] sm:$0xff]
        %v545 = vld [vmem:[%s461 + $0x190] sm:$0xff]
        %v546 = vld [vmem:[%s461 + $0x198] sm:$0xff]
        %v547 = vld [vmem:[%s461 + $0x1a0] sm:$0xff]
        %v548 = vld [vmem:[%s461 + $0x1a8] sm:$0xff]
        %v549 = vld [vmem:[%s461 + $0x1b0] sm:$0xff]
        %v550 = vld [vmem:[%s461 + $0x1b8] sm:$0xff]
        %v551 = vld [vmem:[%s461 + $0x1c0] sm:$0xff]
        %v552 = vld [vmem:[%s461 + $0x1c8] sm:$0xff]
        %v553 = vld [vmem:[%s461 + $0x1d0] sm:$0xff]
        %v554 = vld [vmem:[%s461 + $0x1d8] sm:$0xff]
        %v555 = vld [vmem:[%s461 + $0x1e0] sm:$0xff]
        %v556 = vld [vmem:[%s461 + $0x1e8] sm:$0xff]
        %v557 = vld [vmem:[%s461 + $0x1f0] sm:$0xff]
        %v558 = vld [vmem:[%s461 + $0x1f8] sm:$0xff]
        %vm559 = vcmask 130048
        %v560 = vsel %vm559, %v495, 0.0
        %561 = vadd.xlane.f32.xlu0 %v560
        %v562 = vpop.xlane.xlu0 %561
        %v563 = vsel %vm559, %v496, 0.0
        %564 = vadd.xlane.f32.xlu0 %v563
        %v565 = vpop.xlane.xlu0 %564
        %v566 = vsel %vm559, %v497, 0.0
        %567 = vadd.xlane.f32.xlu0 %v566
        %v568 = vpop.xlane.xlu0 %567
        %v569 = vsel %vm559, %v498, 0.0
        %570 = vadd.xlane.f32.xlu0 %v569
        %v571 = vpop.xlane.xlu0 %570
        %v572 = vsel %vm559, %v499, 0.0
        %573 = vadd.xlane.f32.xlu0 %v572
        %v574 = vpop.xlane.xlu0 %573
        %v575 = vsel %vm559, %v500, 0.0
        %576 = vadd.xlane.f32.xlu0 %v575
        %v577 = vpop.xlane.xlu0 %576
        %v578 = vsel %vm559, %v501, 0.0
        %579 = vadd.xlane.f32.xlu0 %v578
        %v580 = vpop.xlane.xlu0 %579
        %v581 = vsel %vm559, %v502, 0.0
        %582 = vadd.xlane.f32.xlu0 %v581
        %v583 = vpop.xlane.xlu0 %582
        %v584 = vsel %vm559, %v503, 0.0
        %585 = vadd.xlane.f32.xlu0 %v584
        %v586 = vpop.xlane.xlu0 %585
        %v587 = vsel %vm559, %v504, 0.0
        %588 = vadd.xlane.f32.xlu0 %v587
        %v589 = vpop.xlane.xlu0 %588
        %v590 = vsel %vm559, %v505, 0.0
        %591 = vadd.xlane.f32.xlu0 %v590
        %v592 = vpop.xlane.xlu0 %591
        %v593 = vsel %vm559, %v506, 0.0
        %594 = vadd.xlane.f32.xlu0 %v593
        %v595 = vpop.xlane.xlu0 %594
        %v596 = vsel %vm559, %v507, 0.0
        %597 = vadd.xlane.f32.xlu0 %v596
        %v598 = vpop.xlane.xlu0 %597
        %v599 = vsel %vm559, %v508, 0.0
        %600 = vadd.xlane.f32.xlu0 %v599
        %v601 = vpop.xlane.xlu0 %600
        %v602 = vsel %vm559, %v509, 0.0
        %603 = vadd.xlane.f32.xlu0 %v602
        %v604 = vpop.xlane.xlu0 %603
        %v605 = vsel %vm559, %v510, 0.0
        %606 = vadd.xlane.f32.xlu0 %v605
        %v607 = vpop.xlane.xlu0 %606
        %v608 = vsel %vm559, %v511, 0.0
        %609 = vadd.xlane.f32.xlu0 %v608
        %v610 = vpop.xlane.xlu0 %609
        %v611 = vsel %vm559, %v512, 0.0
        %612 = vadd.xlane.f32.xlu0 %v611
        %v613 = vpop.xlane.xlu0 %612
        %v614 = vsel %vm559, %v513, 0.0
        %615 = vadd.xlane.f32.xlu0 %v614
        %v616 = vpop.xlane.xlu0 %615
        %v617 = vsel %vm559, %v514, 0.0
        %618 = vadd.xlane.f32.xlu0 %v617
        %v619 = vpop.xlane.xlu0 %618
        %v620 = vsel %vm559, %v515, 0.0
        %621 = vadd.xlane.f32.xlu0 %v620
        %v622 = vpop.xlane.xlu0 %621
        %v623 = vsel %vm559, %v516, 0.0
        %624 = vadd.xlane.f32.xlu0 %v623
        %v625 = vpop.xlane.xlu0 %624
        %v626 = vsel %vm559, %v517, 0.0
        %627 = vadd.xlane.f32.xlu0 %v626
        %v628 = vpop.xlane.xlu0 %627
        %v629 = vsel %vm559, %v518, 0.0
        %630 = vadd.xlane.f32.xlu0 %v629
        %v631 = vpop.xlane.xlu0 %630
        %v632 = vsel %vm559, %v519, 0.0
        %633 = vadd.xlane.f32.xlu0 %v632
        %v634 = vpop.xlane.xlu0 %633
        %v635 = vsel %vm559, %v520, 0.0
        %636 = vadd.xlane.f32.xlu0 %v635
        %v637 = vpop.xlane.xlu0 %636
        %v638 = vsel %vm559, %v521, 0.0
        %639 = vadd.xlane.f32.xlu0 %v638
        %v640 = vpop.xlane.xlu0 %639
        %v641 = vsel %vm559, %v522, 0.0
        %642 = vadd.xlane.f32.xlu0 %v641
        %v643 = vpop.xlane.xlu0 %642
        %v644 = vsel %vm559, %v523, 0.0
        %645 = vadd.xlane.f32.xlu0 %v644
        %v646 = vpop.xlane.xlu0 %645
        %v647 = vsel %vm559, %v524, 0.0
        %648 = vadd.xlane.f32.xlu0 %v647
        %v649 = vpop.xlane.xlu0 %648
        %v650 = vsel %vm559, %v525, 0.0
        %651 = vadd.xlane.f32.xlu0 %v650
        %v652 = vpop.xlane.xlu0 %651
        %v653 = vsel %vm559, %v526, 0.0
        %654 = vadd.xlane.f32.xlu0 %v653
        %v655 = vpop.xlane.xlu0 %654
        %v656 = vsel %vm559, %v527, 0.0
        %657 = vadd.xlane.f32.xlu0 %v656
        %v658 = vpop.xlane.xlu0 %657
        %v659 = vsel %vm559, %v528, 0.0
        %660 = vadd.xlane.f32.xlu0 %v659
        %v661 = vpop.xlane.xlu0 %660
        %v662 = vsel %vm559, %v529, 0.0
        %663 = vadd.xlane.f32.xlu0 %v662
        %v664 = vpop.xlane.xlu0 %663
        %v665 = vsel %vm559, %v530, 0.0
        %666 = vadd.xlane.f32.xlu0 %v665
        %v667 = vpop.xlane.xlu0 %666
        %v668 = vsel %vm559, %v531, 0.0
        %669 = vadd.xlane.f32.xlu0 %v668
        %v670 = vpop.xlane.xlu0 %669
        %v671 = vsel %vm559, %v532, 0.0
        %672 = vadd.xlane.f32.xlu0 %v671
        %v673 = vpop.xlane.xlu0 %672
        %v674 = vsel %vm559, %v533, 0.0
        %675 = vadd.xlane.f32.xlu0 %v674
        %v676 = vpop.xlane.xlu0 %675
        %v677 = vsel %vm559, %v534, 0.0
        %678 = vadd.xlane.f32.xlu0 %v677
        %v679 = vpop.xlane.xlu0 %678
        %v680 = vsel %vm559, %v535, 0.0
        %681 = vadd.xlane.f32.xlu0 %v680
        %v682 = vpop.xlane.xlu0 %681
        %v683 = vsel %vm559, %v536, 0.0
        %684 = vadd.xlane.f32.xlu0 %v683
        %v685 = vpop.xlane.xlu0 %684
        %v686 = vsel %vm559, %v537, 0.0
        %687 = vadd.xlane.f32.xlu0 %v686
        %v688 = vpop.xlane.xlu0 %687
        %v689 = vsel %vm559, %v538, 0.0
        %690 = vadd.xlane.f32.xlu0 %v689
        %v691 = vpop.xlane.xlu0 %690
        %v692 = vsel %vm559, %v539, 0.0
        %693 = vadd.xlane.f32.xlu0 %v692
        %v694 = vpop.xlane.xlu0 %693
        %v695 = vsel %vm559, %v540, 0.0
        %696 = vadd.xlane.f32.xlu0 %v695
        %v697 = vpop.xlane.xlu0 %696
        %v698 = vsel %vm559, %v541, 0.0
        %699 = vadd.xlane.f32.xlu0 %v698
        %v700 = vpop.xlane.xlu0 %699
        %v701 = vsel %vm559, %v542, 0.0
        %702 = vadd.xlane.f32.xlu0 %v701
        %v703 = vpop.xlane.xlu0 %702
        %v704 = vsel %vm559, %v543, 0.0
        %705 = vadd.xlane.f32.xlu0 %v704
        %v706 = vpop.xlane.xlu0 %705
        %v707 = vsel %vm559, %v544, 0.0
        %708 = vadd.xlane.f32.xlu0 %v707
        %v709 = vpop.xlane.xlu0 %708
        %v710 = vsel %vm559, %v545, 0.0
        %711 = vadd.xlane.f32.xlu0 %v710
        %v712 = vpop.xlane.xlu0 %711
        %v713 = vsel %vm559, %v546, 0.0
        %714 = vadd.xlane.f32.xlu0 %v713
        %v715 = vpop.xlane.xlu0 %714
        %v716 = vsel %vm559, %v547, 0.0
        %717 = vadd.xlane.f32.xlu0 %v716
        %v718 = vpop.xlane.xlu0 %717
        %v719 = vsel %vm559, %v548, 0.0
        %720 = vadd.xlane.f32.xlu0 %v719
        %v721 = vpop.xlane.xlu0 %720
        %v722 = vsel %vm559, %v549, 0.0
        %723 = vadd.xlane.f32.xlu0 %v722
        %v724 = vpop.xlane.xlu0 %723
        %v725 = vsel %vm559, %v550, 0.0
        %726 = vadd.xlane.f32.xlu0 %v725
        %v727 = vpop.xlane.xlu0 %726
        %v728 = vsel %vm559, %v551, 0.0
        %729 = vadd.xlane.f32.xlu0 %v728
        %v730 = vpop.xlane.xlu0 %729
        %v731 = vsel %vm559, %v552, 0.0
        %732 = vadd.xlane.f32.xlu0 %v731
        %v733 = vpop.xlane.xlu0 %732
        %v734 = vsel %vm559, %v553, 0.0
        %735 = vadd.xlane.f32.xlu0 %v734
        %v736 = vpop.xlane.xlu0 %735
        %v737 = vsel %vm559, %v554, 0.0
        %738 = vadd.xlane.f32.xlu0 %v737
        %v739 = vpop.xlane.xlu0 %738
        %v740 = vsel %vm559, %v555, 0.0
        %741 = vadd.xlane.f32.xlu0 %v740
        %v742 = vpop.xlane.xlu0 %741
        %v743 = vsel %vm559, %v556, 0.0
        %744 = vadd.xlane.f32.xlu0 %v743
        %v745 = vpop.xlane.xlu0 %744
        %v746 = vsel %vm559, %v557, 0.0
        %747 = vadd.xlane.f32.xlu0 %v746
        %v748 = vpop.xlane.xlu0 %747
        %v749 = vsel %vm559, %v558, 0.0
        %750 = vadd.xlane.f32.xlu0 %v749
        %v751 = vpop.xlane.xlu0 %750
        %v752 = vld [vmem:[#allocation2] sm:$0x3]
        %v753 = vld [vmem:[%s488] sm:$0xff]
        %v754 = vld [vmem:[%s488 + $0x8] sm:$0xff]
        %v755 = vld [vmem:[%s488 + $0x10] sm:$0xff]
        %v756 = vld [vmem:[%s488 + $0x18] sm:$0xff]
        %v757 = vld [vmem:[%s488 + $0x20] sm:$0xff]
        %v758 = vld [vmem:[%s488 + $0x28] sm:$0xff]
        %v759 = vld [vmem:[%s488 + $0x30] sm:$0xff]
        %v760 = vld [vmem:[%s488 + $0x38] sm:$0xff]
        %v761 = vld [vmem:[%s488 + $0x40] sm:$0xff]
        %v762 = vld [vmem:[%s488 + $0x48] sm:$0xff]
        %v763 = vld [vmem:[%s488 + $0x50] sm:$0xff]
        %v764 = vld [vmem:[%s488 + $0x58] sm:$0xff]
        %v765 = vld [vmem:[%s488 + $0x60] sm:$0xff]
        %v766 = vld [vmem:[%s488 + $0x68] sm:$0xff]
        %v767 = vld [vmem:[%s488 + $0x70] sm:$0xff]
        %v768 = vld [vmem:[%s488 + $0x78] sm:$0xff]
        %v769 = vld [vmem:[%s488 + $0x80] sm:$0xff]
        %v770 = vld [vmem:[%s488 + $0x88] sm:$0xff]
        %v771 = vld [vmem:[%s488 + $0x90] sm:$0xff]
        %v772 = vld [vmem:[%s488 + $0x98] sm:$0xff]
        %v773 = vld [vmem:[%s488 + $0xa0] sm:$0xff]
        %v774 = vld [vmem:[%s488 + $0xa8] sm:$0xff]
        %v775 = vld [vmem:[%s488 + $0xb0] sm:$0xff]
        %v776 = vld [vmem:[%s488 + $0xb8] sm:$0xff]
        %v777 = vld [vmem:[%s488 + $0xc0] sm:$0xff]
        %v778 = vld [vmem:[%s488 + $0xc8] sm:$0xff]
        %v779 = vld [vmem:[%s488 + $0xd0] sm:$0xff]
        %v780 = vld [vmem:[%s488 + $0xd8] sm:$0xff]
        %v781 = vld [vmem:[%s488 + $0xe0] sm:$0xff]
        %v782 = vld [vmem:[%s488 + $0xe8] sm:$0xff]
        %v783 = vld [vmem:[%s488 + $0xf0] sm:$0xff]
        %v784 = vld [vmem:[%s488 + $0xf8] sm:$0xff]
        %v849 = vlaneseq
        %v850 = vand.u32 %v849, 127
        %v851 = vlaneseq
        %v852 = vshrl.u32 %v851, 7
        %v853 = vsub.s32 %v850, %v852
        %v854 = vrot.slane %v562, %v853
        %v855 = vadd.s32 %v850, 4294967288
        %v856 = vlaneseq
        %v857 = vshrl.u32 %v856, 7
        %v858 = vsub.s32 %v855, %v857
        %v859 = vrot.slane %v565, %v858
        %vm860 = vcmask 130112
        %v861 = vsel %vm860, %v859, %v854
        %v862 = vadd.s32 %v850, 4294967280
        %v863 = vlaneseq
        %v864 = vshrl.u32 %v863, 7
        %v865 = vsub.s32 %v862, %v864
        %v866 = vrot.slane %v568, %v865
        %vm867 = vcmask 195712
        %v868 = vsel %vm867, %v866, %v861
        %v869 = vadd.s32 %v850, 4294967272
        %v870 = vlaneseq
        %v871 = vshrl.u32 %v870, 7
        %v872 = vsub.s32 %v869, %v871
        %v873 = vrot.slane %v571, %v872
        %vm874 = vcmask 261312
        %v875 = vsel %vm874, %v873, %v868
        %v876 = vadd.s32 %v850, 4294967264
        %v877 = vlaneseq
        %v878 = vshrl.u32 %v877, 7
        %v879 = vsub.s32 %v876, %v878
        %v880 = vrot.slane %v574, %v879
        %vm881 = vcmask 326912
        %v882 = vsel %vm881, %v880, %v875
        %v883 = vadd.s32 %v850, 4294967256
        %v884 = vlaneseq
        %v885 = vshrl.u32 %v884, 7
        %v886 = vsub.s32 %v883, %v885
        %v887 = vrot.slane %v577, %v886
        %vm888 = vcmask 392512
        %v889 = vsel %vm888, %v887, %v882
        %v890 = vadd.s32 %v850, 4294967248
        %v891 = vlaneseq
        %v892 = vshrl.u32 %v891, 7
        %v893 = vsub.s32 %v890, %v892
        %v894 = vrot.slane %v580, %v893
        %vm895 = vcmask 458112
        %v896 = vsel %vm895, %v894, %v889
        %v897 = vadd.s32 %v850, 4294967240
        %v898 = vlaneseq
        %v899 = vshrl.u32 %v898, 7
        %v900 = vsub.s32 %v897, %v899
        %v901 = vrot.slane %v583, %v900
        %vm902 = vcmask 523712
        %v903 = vsel %vm902, %v901, %v896
        %v904 = vadd.s32 %v850, 4294967232
        %v905 = vlaneseq
        %v906 = vshrl.u32 %v905, 7
        %v907 = vsub.s32 %v904, %v906
        %v908 = vrot.slane %v586, %v907
        %vm909 = vcmask 589312
        %v910 = vsel %vm909, %v908, %v903
        %v911 = vadd.s32 %v850, 4294967224
        %v912 = vlaneseq
        %v913 = vshrl.u32 %v912, 7
        %v914 = vsub.s32 %v911, %v913
        %v915 = vrot.slane %v589, %v914
        %vm916 = vcmask 654912
        %v917 = vsel %vm916, %v915, %v910
        %v918 = vadd.s32 %v850, 4294967216
        %v919 = vlaneseq
        %v920 = vshrl.u32 %v919, 7
        %v921 = vsub.s32 %v918, %v920
        %v922 = vrot.slane %v592, %v921
        %vm923 = vcmask 720512
        %v924 = vsel %vm923, %v922, %v917
        %v925 = vadd.s32 %v850, 4294967208
        %v926 = vlaneseq
        %v927 = vshrl.u32 %v926, 7
        %v928 = vsub.s32 %v925, %v927
        %v929 = vrot.slane %v595, %v928
        %vm930 = vcmask 786112
        %v931 = vsel %vm930, %v929, %v924
        %v932 = vadd.s32 %v850, 4294967200
        %v933 = vlaneseq
        %v934 = vshrl.u32 %v933, 7
        %v935 = vsub.s32 %v932, %v934
        %v936 = vrot.slane %v598, %v935
        %vm937 = vcmask 851712
        %v938 = vsel %vm937, %v936, %v931
        %v939 = vadd.s32 %v850, 4294967192
        %v940 = vlaneseq
        %v941 = vshrl.u32 %v940, 7
        %v942 = vsub.s32 %v939, %v941
        %v943 = vrot.slane %v601, %v942
        %vm944 = vcmask 917312
        %v945 = vsel %vm944, %v943, %v938
        %v946 = vadd.s32 %v850, 4294967184
        %v947 = vlaneseq
        %v948 = vshrl.u32 %v947, 7
        %v949 = vsub.s32 %v946, %v948
        %v950 = vrot.slane %v604, %v949
        %vm951 = vcmask 982912
        %v952 = vsel %vm951, %v950, %v945
        %v953 = vadd.s32 %v850, 4294967176
        %v954 = vlaneseq
        %v955 = vshrl.u32 %v954, 7
        %v956 = vsub.s32 %v953, %v955
        %v957 = vrot.slane %v607, %v956
        %vm958 = vcmask 1048512
        %v959 = vsel %vm958, %v957, %v952
        %v960 = vlaneseq
        %v961 = vshrl.u32 %v960, 7
        %v962 = vsub.s32 %v850, %v961
        %v963 = vrot.slane %v610, %v962
        %v964 = vlaneseq
        %v965 = vshrl.u32 %v964, 7
        %v966 = vsub.s32 %v855, %v965
        %v967 = vrot.slane %v613, %v966
        %v968 = vsel %vm860, %v967, %v963
        %v969 = vlaneseq
        %v970 = vshrl.u32 %v969, 7
        %v971 = vsub.s32 %v862, %v970
        %v972 = vrot.slane %v616, %v971
        %v973 = vsel %vm867, %v972, %v968
        %v974 = vlaneseq
        %v975 = vshrl.u32 %v974, 7
        %v976 = vsub.s32 %v869, %v975
        %v977 = vrot.slane %v619, %v976
        %v978 = vsel %vm874, %v977, %v973
        %v979 = vlaneseq
        %v980 = vshrl.u32 %v979, 7
        %v981 = vsub.s32 %v876, %v980
        %v982 = vrot.slane %v622, %v981
        %v983 = vsel %vm881, %v982, %v978
        %v984 = vlaneseq
        %v985 = vshrl.u32 %v984, 7
        %v986 = vsub.s32 %v883, %v985
        %v987 = vrot.slane %v625, %v986
        %v988 = vsel %vm888, %v987, %v983
        %v989 = vlaneseq
        %v990 = vshrl.u32 %v989, 7
        %v991 = vsub.s32 %v890, %v990
        %v992 = vrot.slane %v628, %v991
        %v993 = vsel %vm895, %v992, %v988
        %v994 = vlaneseq
        %v995 = vshrl.u32 %v994, 7
        %v996 = vsub.s32 %v897, %v995
        %v997 = vrot.slane %v631, %v996
        %v998 = vsel %vm902, %v997, %v993
        %v999 = vlaneseq
        %v1000 = vshrl.u32 %v999, 7
        %v1001 = vsub.s32 %v904, %v1000
        %v1002 = vrot.slane %v634, %v1001
        %v1003 = vsel %vm909, %v1002, %v998
        %v1004 = vlaneseq
        %v1005 = vshrl.u32 %v1004, 7
        %v1006 = vsub.s32 %v911, %v1005
        %v1007 = vrot.slane %v637, %v1006
        %v1008 = vsel %vm916, %v1007, %v1003
        %v1009 = vlaneseq
        %v1010 = vshrl.u32 %v1009, 7
        %v1011 = vsub.s32 %v918, %v1010
        %v1012 = vrot.slane %v640, %v1011
        %v1013 = vsel %vm923, %v1012, %v1008
        %v1014 = vlaneseq
        %v1015 = vshrl.u32 %v1014, 7
        %v1016 = vsub.s32 %v925, %v1015
        %v1017 = vrot.slane %v643, %v1016
        %v1018 = vsel %vm930, %v1017, %v1013
        %v1019 = vlaneseq
        %v1020 = vshrl.u32 %v1019, 7
        %v1021 = vsub.s32 %v932, %v1020
        %v1022 = vrot.slane %v646, %v1021
        %v1023 = vsel %vm937, %v1022, %v1018
        %v1024 = vlaneseq
        %v1025 = vshrl.u32 %v1024, 7
        %v1026 = vsub.s32 %v939, %v1025
        %v1027 = vrot.slane %v649, %v1026
        %v1028 = vsel %vm944, %v1027, %v1023
        %v1029 = vlaneseq
        %v1030 = vshrl.u32 %v1029, 7
        %v1031 = vsub.s32 %v946, %v1030
        %v1032 = vrot.slane %v652, %v1031
        %v1033 = vsel %vm951, %v1032, %v1028
        %v1034 = vlaneseq
        %v1035 = vshrl.u32 %v1034, 7
        %v1036 = vsub.s32 %v953, %v1035
        %v1037 = vrot.slane %v655, %v1036
        %v1038 = vsel %vm958, %v1037, %v1033
        %v1039 = vlaneseq
        %v1040 = vshrl.u32 %v1039, 7
        %v1041 = vsub.s32 %v850, %v1040
        %v1042 = vrot.slane %v658, %v1041
        %v1043 = vlaneseq
        %v1044 = vshrl.u32 %v1043, 7
        %v1045 = vsub.s32 %v855, %v1044
        %v1046 = vrot.slane %v661, %v1045
        %v1047 = vsel %vm860, %v1046, %v1042
        %v1048 = vlaneseq
        %v1049 = vshrl.u32 %v1048, 7
        %v1050 = vsub.s32 %v862, %v1049
        %v1051 = vrot.slane %v664, %v1050
        %v1052 = vsel %vm867, %v1051, %v1047
        %v1053 = vlaneseq
        %v1054 = vshrl.u32 %v1053, 7
        %v1055 = vsub.s32 %v869, %v1054
        %v1056 = vrot.slane %v667, %v1055
        %v1057 = vsel %vm874, %v1056, %v1052
        %v1058 = vlaneseq
        %v1059 = vshrl.u32 %v1058, 7
        %v1060 = vsub.s32 %v876, %v1059
        %v1061 = vrot.slane %v670, %v1060
        %v1062 = vsel %vm881, %v1061, %v1057
        %v1063 = vlaneseq
        %v1064 = vshrl.u32 %v1063, 7
        %v1065 = vsub.s32 %v883, %v1064
        %v1066 = vrot.slane %v673, %v1065
        %v1067 = vsel %vm888, %v1066, %v1062
        %v1068 = vlaneseq
        %v1069 = vshrl.u32 %v1068, 7
        %v1070 = vsub.s32 %v890, %v1069
        %v1071 = vrot.slane %v676, %v1070
        %v1072 = vsel %vm895, %v1071, %v1067
        %v1073 = vlaneseq
        %v1074 = vshrl.u32 %v1073, 7
        %v1075 = vsub.s32 %v897, %v1074
        %v1076 = vrot.slane %v679, %v1075
        %v1077 = vsel %vm902, %v1076, %v1072
        %v1078 = vlaneseq
        %v1079 = vshrl.u32 %v1078, 7
        %v1080 = vsub.s32 %v904, %v1079
        %v1081 = vrot.slane %v682, %v1080
        %v1082 = vsel %vm909, %v1081, %v1077
        %v1083 = vlaneseq
        %v1084 = vshrl.u32 %v1083, 7
        %v1085 = vsub.s32 %v911, %v1084
        %v1086 = vrot.slane %v685, %v1085
        %v1087 = vsel %vm916, %v1086, %v1082
        %v1088 = vlaneseq
        %v1089 = vshrl.u32 %v1088, 7
        %v1090 = vsub.s32 %v918, %v1089
        %v1091 = vrot.slane %v688, %v1090
        %v1092 = vsel %vm923, %v1091, %v1087
        %v1093 = vlaneseq
        %v1094 = vshrl.u32 %v1093, 7
        %v1095 = vsub.s32 %v925, %v1094
        %v1096 = vrot.slane %v691, %v1095
        %v1097 = vsel %vm930, %v1096, %v1092
        %v1098 = vlaneseq
        %v1099 = vshrl.u32 %v1098, 7
        %v1100 = vsub.s32 %v932, %v1099
        %v1101 = vrot.slane %v694, %v1100
        %v1102 = vsel %vm937, %v1101, %v1097
        %v1103 = vlaneseq
        %v1104 = vshrl.u32 %v1103, 7
        %v1105 = vsub.s32 %v939, %v1104
        %v1106 = vrot.slane %v697, %v1105
        %v1107 = vsel %vm944, %v1106, %v1102
        %v1108 = vlaneseq
        %v1109 = vshrl.u32 %v1108, 7
        %v1110 = vsub.s32 %v946, %v1109
        %v1111 = vrot.slane %v700, %v1110
        %v1112 = vsel %vm951, %v1111, %v1107
        %v1113 = vlaneseq
        %v1114 = vshrl.u32 %v1113, 7
        %v1115 = vsub.s32 %v953, %v1114
        %v1116 = vrot.slane %v703, %v1115
        %v1117 = vsel %vm958, %v1116, %v1112
        %v1118 = vlaneseq
        %v1119 = vshrl.u32 %v1118, 7
        %v1120 = vsub.s32 %v850, %v1119
        %v1121 = vrot.slane %v706, %v1120
        %v1122 = vlaneseq
        %v1123 = vshrl.u32 %v1122, 7
        %v1124 = vsub.s32 %v855, %v1123
        %v1125 = vrot.slane %v709, %v1124
        %v1126 = vsel %vm860, %v1125, %v1121
        %v1127 = vlaneseq
        %v1128 = vshrl.u32 %v1127, 7
        %v1129 = vsub.s32 %v862, %v1128
        %v1130 = vrot.slane %v712, %v1129
        %v1131 = vsel %vm867, %v1130, %v1126
        %v1132 = vlaneseq
        %v1133 = vshrl.u32 %v1132, 7
        %v1134 = vsub.s32 %v869, %v1133
        %v1135 = vrot.slane %v715, %v1134
        %v1136 = vsel %vm874, %v1135, %v1131
        %v1137 = vlaneseq
        %v1138 = vshrl.u32 %v1137, 7
        %v1139 = vsub.s32 %v876, %v1138
        %v1140 = vrot.slane %v718, %v1139
        %v1141 = vsel %vm881, %v1140, %v1136
        %v1142 = vlaneseq
        %v1143 = vshrl.u32 %v1142, 7
        %v1144 = vsub.s32 %v883, %v1143
        %v1145 = vrot.slane %v721, %v1144
        %v1146 = vsel %vm888, %v1145, %v1141
        %v1147 = vlaneseq
        %v1148 = vshrl.u32 %v1147, 7
        %v1149 = vsub.s32 %v890, %v1148
        %v1150 = vrot.slane %v724, %v1149
        %v1151 = vsel %vm895, %v1150, %v1146
        %v1152 = vlaneseq
        %v1153 = vshrl.u32 %v1152, 7
        %v1154 = vsub.s32 %v897, %v1153
        %v1155 = vrot.slane %v727, %v1154
        %v1156 = vsel %vm902, %v1155, %v1151
        %v1157 = vlaneseq
        %v1158 = vshrl.u32 %v1157, 7
        %v1159 = vsub.s32 %v904, %v1158
        %v1160 = vrot.slane %v730, %v1159
        %v1161 = vsel %vm909, %v1160, %v1156
        %v1162 = vlaneseq
        %v1163 = vshrl.u32 %v1162, 7
        %v1164 = vsub.s32 %v911, %v1163
        %v1165 = vrot.slane %v733, %v1164
        %v1166 = vsel %vm916, %v1165, %v1161
        %v1167 = vlaneseq
        %v1168 = vshrl.u32 %v1167, 7
        %v1169 = vsub.s32 %v918, %v1168
        %v1170 = vrot.slane %v736, %v1169
        %v1171 = vsel %vm923, %v1170, %v1166
        %v1172 = vlaneseq
        %v1173 = vshrl.u32 %v1172, 7
        %v1174 = vsub.s32 %v925, %v1173
        %v1175 = vrot.slane %v739, %v1174
        %v1176 = vsel %vm930, %v1175, %v1171
        %v1177 = vlaneseq
        %v1178 = vshrl.u32 %v1177, 7
        %v1179 = vsub.s32 %v932, %v1178
        %v1180 = vrot.slane %v742, %v1179
        %v1181 = vsel %vm937, %v1180, %v1176
        %v1182 = vlaneseq
        %v1183 = vshrl.u32 %v1182, 7
        %v1184 = vsub.s32 %v939, %v1183
        %v1185 = vrot.slane %v745, %v1184
        %v1186 = vsel %vm944, %v1185, %v1181
        %v1187 = vlaneseq
        %v1188 = vshrl.u32 %v1187, 7
        %v1189 = vsub.s32 %v946, %v1188
        %v1190 = vrot.slane %v748, %v1189
        %v1191 = vsel %vm951, %v1190, %v1186
        %v1192 = vlaneseq
        %v1193 = vshrl.u32 %v1192, 7
        %v1194 = vsub.s32 %v953, %v1193
        %v1195 = vrot.slane %v751, %v1194
        %v1196 = vsel %vm958, %v1195, %v1191
        %vm1197 = vcmask 1041409
        %v1198 = vsel %vm1197, %v1117, %v959
        %v1199 = vsel %vm1197, %v1196, %v1038
        %1202 = vmatprep.subr.mxu0 0.0
        %1203 = vmatpush1.msra.mxu0 %v753
        %1204 = vmatprep.subr.mxu0 0.0
        %1205 = vmatpush1.msra.mxu0 %v754
        %1206 = vmatprep.subr.mxu0 0.0
        %1207 = vmatpush1.msra.mxu0 %v755
        %1208 = vmatprep.subr.mxu0 0.0
        %1209 = vmatpush1.msra.mxu0 %v756
        %1210 = vmatprep.subr.mxu0 0.0
        %1211 = vmatpush1.msra.mxu0 %v757
        %1212 = vmatprep.subr.mxu0 0.0
        %1213 = vmatpush1.msra.mxu0 %v758
        %1214 = vmatprep.subr.mxu0 0.0
        %1215 = vmatpush1.msra.mxu0 %v759
        %1216 = vmatprep.subr.mxu0 0.0
        %1217 = vmatpush1.msra.mxu0 %v760
        %1218 = vmatprep.subr.mxu0 0.0
        %1219 = vmatpush1.msra.mxu0 %v761
        %1220 = vmatprep.subr.mxu0 0.0
        %1221 = vmatpush1.msra.mxu0 %v762
        %1222 = vmatprep.subr.mxu0 0.0
        %1223 = vmatpush1.msra.mxu0 %v763
        %1224 = vmatprep.subr.mxu0 0.0
        %1225 = vmatpush1.msra.mxu0 %v764
        %1226 = vmatprep.subr.mxu0 0.0
        %1227 = vmatpush1.msra.mxu0 %v765
        %1228 = vmatprep.subr.mxu0 0.0
        %1229 = vmatpush1.msra.mxu0 %v766
        %1230 = vmatprep.subr.mxu0 0.0
        %1231 = vmatpush1.msra.mxu0 %v767
        %1232 = vmatprep.subr.mxu0 0.0
        %1233 = vmatpush1.msra.mxu0 %v768
        %1234 = vmatprep.subr.mxu0 0.0
        %1235 = vmatpush1.msra.mxu0 %v769
        %1236 = vmatprep.subr.mxu0 0.0
        %1237 = vmatpush1.msra.mxu0 %v770
        %1238 = vmatprep.subr.mxu0 0.0
        %1239 = vmatpush1.msra.mxu0 %v771
        %1240 = vmatprep.subr.mxu0 0.0
        %1241 = vmatpush1.msra.mxu0 %v772
        %1242 = vmatprep.subr.mxu0 0.0
        %1243 = vmatpush1.msra.mxu0 %v773
        %1244 = vmatprep.subr.mxu0 0.0
        %1245 = vmatpush1.msra.mxu0 %v774
        %1246 = vmatprep.subr.mxu0 0.0
        %1247 = vmatpush1.msra.mxu0 %v775
        %1248 = vmatprep.subr.mxu0 0.0
        %1249 = vmatpush1.msra.mxu0 %v776
        %1250 = vmatprep.subr.mxu0 0.0
        %1251 = vmatpush1.msra.mxu0 %v777
        %1252 = vmatprep.subr.mxu0 0.0
        %1253 = vmatpush1.msra.mxu0 %v778
        %1254 = vmatprep.subr.mxu0 0.0
        %1255 = vmatpush1.msra.mxu0 %v779
        %1256 = vmatprep.subr.mxu0 0.0
        %1257 = vmatpush1.msra.mxu0 %v780
        %1258 = vmatprep.subr.mxu0 0.0
        %1259 = vmatpush1.msra.mxu0 %v781
        %1260 = vmatprep.subr.mxu0 0.0
        %1261 = vmatpush1.msra.mxu0 %v782
        %1262 = vmatprep.subr.mxu0 0.0
        %1263 = vmatpush1.msra.mxu0 %v783
        %1264 = vmatprep.subr.mxu0 0.0
        %1265 = vmatpush1.msra.mxu0 %v784
        %1266 = vmatprep.mubr.f32.mxu0 %v1199
        %1267 = vmatmul.mubr.f32.gmra.mrb[0].mxu0 %v1198
        %v1268 = vpop.f32.mrb[0].mxu0
        %v1269 = vadd.f32 0.0, %v1268
        %v1270 = vpop.f32.mrb[0].mxu0
        %1271 = vdwg.mxu0
        %v1272 = vadd.f32 %v752, %v1269
        %1273 = vst [vmem:[#allocation2] sm:$0x3] %v1272
        %p1274 = scmp.eq.s32.totalorder %s20, 7
        // Predicated region
        $region75: #{tpu_custom_call.1} parent=65 // pred_check
          %p1275 = pneg %p1274
        $region76: #{tpu_custom_call.1} parent=65 // pred_check_branch
          %1277 = sbr.rel (%p1275) target = $region78
        $region77: #{tpu_custom_call.1} parent=65 // pred_region
          %v1278 = vld [vmem:[#allocation2] sm:$0x3]
          %v1279 = vmul.f32 %v1278, 0.0625
          %v1280 = vld [vmem:[%s2] sm:$0x1]
          %v1282 = vlaneseq
          %v1283 = vshrl.u32 %v1282, 7
          %v1284 = vsub.s32 0, %v1283
          %v1285 = vrot.slane %v1280, %v1284
          %v1287 = vadd.f32 %v1279, %v1285
          %1288 = vst [vmem:[#allocation4] sm:$0x3] %v1287
        $region78: #{tpu_custom_call.1} parent=65 // pred_fallthru
          _
        // Predicated region
        $region79: #{tpu_custom_call.1} parent=65 // pred_check
          %p1289 = pneg %p120
        $region80: #{tpu_custom_call.1} parent=65 // pred_check_branch
          %1291 = sbr.rel (%p1289) target = $region82
        $region81: #{tpu_custom_call.1} parent=65 // pred_region
          %s1293 = ssub.s32 32, 32
          %1294 = vsyncadd [#allocation5], %s1293
          %s1295 = smul.addr %s19, 32
          %s1296 = scalar_lea.hbm %s3, %s1295
          %s1298 = sshll.u32 [#allocation4], 4
          %s1299 = int_to_ptr.vmem [resolvable:$true] %s1298
          %1301 = dma.vmem_to_hbm [thread:$0]  %s1299, 32, %s1296, [#allocation5]
        $region82: #{tpu_custom_call.1} parent=65 // pred_fallthru
          _
        // Predicated region
        $region83: #{tpu_custom_call.1} parent=65 // pred_check
          %p1302 = pneg %p120
        $region84: #{tpu_custom_call.1} parent=65 // pred_check_branch
          %1304 = sbr.rel (%p1302) target = $region86
        $region85: #{tpu_custom_call.1} parent=65 // pred_region
          %1305 = dma.done [#allocation5], 32
        $region86: #{tpu_custom_call.1} parent=65 // pred_fallthru
          _
      $region66: #{tpu_custom_call.1} parent=5 // pred_fallthru
        _
      %p1306 = scmp.le.s32.totalorder 2, %s10
      // Predicated region
      $region87: #{tpu_custom_call.1} parent=5 // pred_check
        %p1307 = pneg %p1306
      $region88: #{tpu_custom_call.1} parent=5 // pred_check_branch
        %1309 = sbr.rel (%p1307) target = $region90
      $region89: #{tpu_custom_call.1} parent=5 // pred_region
        %s1310 = ssub.s32 %s10, 2
      $region90: #{tpu_custom_call.1} parent=5 // pred_fallthru
        _
    $region6: #{tpu_custom_call.1} parent=1 // loop_footer
      %s14 = sadd.s32 1, %s10
    $region7: #{tpu_custom_call.1} parent=1 // loop_footer_branch
      %9 = sbr.rel target = $region3
    $region8: #{tpu_custom_call.1} parent=1 // loop_exit
      _
    %1311 = vsyncpa [#allocation5], 1
    %s1312 = scalar_lea.sflag [#allocation5], 1
    %1313 = vsyncpa %s1312, 1

</llo_original>
